<compile_context>
chip_gen: v5e
topology: v5e:2x2
jax: 0.10.0
libtpu: 0.0.40
codegen_flags: <defaults>
</compile_context>

<pallas_src>
from functools import partial

import jax
import jax.numpy as jnp
from jax.experimental import pallas as pl
from jax.experimental.pallas import tpu as pltpu


def anet_kernel(x_ref, w1_ref, b1_ref, w2_ref, b2_ref, o_ref, *, sub):
    # Transposed ("feature-major") layout: batch maps to lanes.
    w1 = w1_ref[...]                       # (H, S)   H = 30, S = 3
    b1 = b1_ref[...]                       # (H, 1)
    w2 = w2_ref[...]                       # (A, H)
    b2 = b2_ref[...]                       # (A, 1)
    s_dim = w1.shape[1]
    n_sub = x_ref.shape[-1] // sub         # static; tile width is a multiple of sub

    def body(j, carry):
        c0 = pl.multiple_of(j * sub, sub)  # lane offset (multiple of 128)
        x = x_ref[:, pl.ds(c0, sub)]       # (S, sub)
        # Layer 1: depth-3 contraction as broadcast multiply-adds on the VPU
        # (a K=3 matmul wastes the MXU and still pays push/pop latency).
        h = b1                             # (H, 1) -> broadcasts to (H, sub)
        for k in range(s_dim):             # static trip count (3), unrolled at trace
            h = h + w1[:, k:k + 1] * x[k:k + 1, :]
        h = jnp.maximum(h, 0.0)            # relu(net(x))                (H, sub)
        # Layer 2 (K = 30) on the MXU, f32 accumulation.
        y = jnp.dot(w2, h, preferred_element_type=jnp.float32) + b2      # (A, sub)
        o_ref[:, pl.ds(c0, sub)] = 2.0 * jnp.tanh(y)
        return carry

    # Fully unrolled (static bounds) so slice starts become constants and the
    # scheduler sees the whole tile; working set per sub-tile stays vreg-resident.
    jax.lax.fori_loop(0, n_sub, body, 0, unroll=True)


def _pick_sub(tb_eff, sub_max):
    """Largest multiple of 128 that divides tb_eff and is <= sub_max."""
    best = 128
    c = 128
    while c <= min(sub_max, tb_eff):
        if tb_eff % c == 0:
            best = c
        c += 128
    return best


@partial(jax.jit, static_argnames=("tb", "sub"))
def anet_forward(x, w1, b1, w2, b2, *, tb=2048, sub=512):
    """x: (B, s_dim) f32; w1: (s_dim, H); b1: (1, H); w2: (H, a_dim); b2: (1, a_dim)."""
    B, s_dim = x.shape
    hidden, a_dim = w2.shape

    # --- tiling ---------------------------------------------------------------
    # Lane alignment only needs a multiple of 128 (no 512-column floor).
    b128 = pl.cdiv(B, 128) * 128
    # Grid steps: enough to cover b128 with <=tb-wide tiles, and at least 2 when
    # the batch spans more than one lane tile so v7x's two TCs both get work.
    n_steps = max(pl.cdiv(b128, tb), 2 if b128 > 128 else 1)
    tb_eff = pl.cdiv(pl.cdiv(b128, n_steps), 128) * 128   # tile width (mult. of 128)
    bp = n_steps * tb_eff                                  # padded batch
    sub_eff = _pick_sub(tb_eff, sub)                       # vreg-bounded inner width

    # --- lane-dense layout: batch on the lane (last) axis ----------------------
    # (Under jit the transpose + pad fuse into a single HBM copy.)
    x_t = x.T                                              # (s_dim, B)
    if bp != B:
        x_t = jnp.pad(x_t, ((0, 0), (0, bp - B)))
    w1_t = w1.T                                            # (H, s_dim)
    b1_t = b1.T                                            # (H, 1)
    w2_t = w2.T                                            # (a_dim, H)
    b2_t = b2.T                                            # (a_dim, 1)

    cost = pl.CostEstimate(
        flops=2 * bp * (s_dim * hidden + hidden * a_dim),
        transcendentals=bp * a_dim,
        bytes_accessed=4 * (bp * (s_dim + a_dim)
                            + s_dim * hidden + hidden + hidden * a_dim + a_dim),
    )

    out_t = pl.pallas_call(
        partial(anet_kernel, sub=sub_eff),
        out_shape=jax.ShapeDtypeStruct((a_dim, bp), jnp.float32),
        grid=(n_steps,),
        in_specs=[
            pl.BlockSpec((s_dim, tb_eff), lambda i: (0, i)),    # x tile (streamed)
            pl.BlockSpec((hidden, s_dim), lambda i: (0, 0)),    # weights/biases stay
            pl.BlockSpec((hidden, 1), lambda i: (0, 0)),        #   VMEM-resident
            pl.BlockSpec((a_dim, hidden), lambda i: (0, 0)),    #   across the grid
            pl.BlockSpec((a_dim, 1), lambda i: (0, 0)),
        ],
        out_specs=pl.BlockSpec((a_dim, tb_eff), lambda i: (0, i)),
        compiler_params=pltpu.CompilerParams(
            dimension_semantics=("parallel",)),                 # v7x: 2 TCs share batch
        cost_estimate=cost,
    )(x_t, w1_t, b1_t, w2_t, b2_t)

    # Padded columns contain harmless garbage; slice before returning.
    return out_t[:, :B].T                                       # (B, a_dim)


def anet_reference(x, w1, b1, w2, b2):
    """Pure-JAX reference at highest matmul precision."""
    h = jnp.maximum(jnp.dot(x, w1, precision=jax.lax.Precision.HIGHEST) + b1, 0.0)
    y = jnp.dot(h, w2, precision=jax.lax.Precision.HIGHEST) + b2
    return 2.0 * jnp.tanh(y)


def init_params(key, s_dim=3, a_dim=4, hidden=30):
    # Deterministic synthetic init mirroring the PyTorch module:
    #   weights ~ normal(0, 0.1); biases ~ Linear default U(-1/sqrt(fan_in), +1/sqrt(fan_in)).
    k1, k2, k3, k4 = jax.random.split(key, 4)
    # global `net` fc: Linear(3, 30)  (the layer actually used in forward)
    w1 = (jax.random.normal(k1, (hidden, s_dim), jnp.float32) * 0.1).T   # (3, 30)
    b1 = jax.random.uniform(k2, (1, hidden), jnp.float32,
                            -1.0 / jnp.sqrt(float(s_dim)), 1.0 / jnp.sqrt(float(s_dim)))
    # self.out: Linear(30, a_dim)
    w2 = (jax.random.normal(k3, (a_dim, hidden), jnp.float32) * 0.1).T   # (30, a_dim)
    b2 = jax.random.uniform(k4, (1, a_dim), jnp.float32,
                            -1.0 / jnp.sqrt(float(hidden)), 1.0 / jnp.sqrt(float(hidden)))
    # TODO(synk): ANet.__init__ also builds fc_1 (Net) and fc_s (Linear(s_dim,30)),
    # but forward never uses them, so they are not materialized here.
    return w1, b1, w2, b2


if __name__ == "__main__":
    key = jax.random.PRNGKey(0)
    kx, kx2, kx3, kp = jax.random.split(key, 4)

    S_DIM, A_DIM, HIDDEN = 3, 4, 30
    w1, b1, w2, b2 = init_params(kp, s_dim=S_DIM, a_dim=A_DIM, hidden=HIDDEN)

    # Tiny RL batch: pads only to one 128-lane tile, single grid step.
    x_small = jax.random.normal(kx, (8, S_DIM), jnp.float32)
    out_small = jax.block_until_ready(anet_forward(x_small, w1, b1, w2, b2))
    ref_small = anet_reference(x_small, w1, b1, w2, b2)
    assert out_small.shape == (8, A_DIM)
    assert jnp.allclose(out_small, ref_small, atol=5e-3, rtol=5e-3)

    # Mid batch: exercises the >=2-step grid (v7x sharding) + padding path.
    x_mid = jax.random.normal(kx3, (300, S_DIM), jnp.float32)
    out_mid = jax.block_until_ready(anet_forward(x_mid, w1, b1, w2, b2))
    ref_mid = anet_reference(x_mid, w1, b1, w2, b2)
    assert out_mid.shape == (300, A_DIM)
    assert jnp.allclose(out_mid, ref_mid, atol=5e-3, rtol=5e-3)

    # Larger, non-tile-multiple batch: multi-step grid + inner sub-tile loop.
    x_big = jax.random.normal(kx2, (1200, S_DIM), jnp.float32)
    out_big = jax.block_until_ready(anet_forward(x_big, w1, b1, w2, b2))
    ref_big = anet_reference(x_big, w1, b1, w2, b2)
    assert out_big.shape == (1200, A_DIM)
    assert jnp.allclose(out_big, ref_big, atol=5e-3, rtol=5e-3)

    print("KERNEL_OK")
</pallas_src>

<mosaic_0001>
module attributes {stable_mosaic.version = 11 : i64} {
  func.func @anet_kernel(%arg0: i32, %arg1: memref<3x128xf32, #tpu.memory_space<vmem>>, %arg2: memref<30x3xf32, #tpu.memory_space<vmem>>, %arg3: memref<30x1xf32, #tpu.memory_space<vmem>>, %arg4: memref<4x30xf32, #tpu.memory_space<vmem>>, %arg5: memref<4x1xf32, #tpu.memory_space<vmem>>, %arg6: memref<4x128xf32, #tpu.memory_space<vmem>>) attributes {dimension_semantics = [#tpu.dimension_semantics<parallel>], iteration_bounds = array<i64: 1>, scalar_prefetch = 0 : i64, scratch_operands = 0 : i64, tpu.core_type = #tpu.core_type<tc>, window_params = [{transform_indices = @transform_0, window_bounds = array<i64: 3, 128>}, {pipeline_mode = #tpu.pipeline_mode<synchronous>, transform_indices = @transform_1, window_bounds = array<i64: 30, 3>}, {pipeline_mode = #tpu.pipeline_mode<synchronous>, transform_indices = @transform_2, window_bounds = array<i64: 30, 1>}, {pipeline_mode = #tpu.pipeline_mode<synchronous>, transform_indices = @transform_3, window_bounds = array<i64: 4, 30>}, {pipeline_mode = #tpu.pipeline_mode<synchronous>, transform_indices = @transform_4, window_bounds = array<i64: 4, 1>}, {transform_indices = @transform_5, window_bounds = array<i64: 4, 128>}]} {
    %c0 = arith.constant 0 : index
    %c0_0 = arith.constant 0 : index
    %0 = vector.load %arg2[%c0, %c0_0] : memref<30x3xf32, #tpu.memory_space<vmem>>, vector<30x3xf32>
    %c0_1 = arith.constant 0 : index
    %c0_2 = arith.constant 0 : index
    %1 = vector.load %arg3[%c0_1, %c0_2] : memref<30x1xf32, #tpu.memory_space<vmem>>, vector<30x1xf32>
    %c0_3 = arith.constant 0 : index
    %c0_4 = arith.constant 0 : index
    %2 = vector.load %arg4[%c0_3, %c0_4] : memref<4x30xf32, #tpu.memory_space<vmem>>, vector<4x30xf32>
    %c0_5 = arith.constant 0 : index
    %c0_6 = arith.constant 0 : index
    %3 = vector.load %arg5[%c0_5, %c0_6] : memref<4x1xf32, #tpu.memory_space<vmem>>, vector<4x1xf32>
    %c0_i32 = arith.constant 0 : i32
    %c128_i32 = arith.constant 128 : i32
    %4 = arith.muli %c0_i32, %c128_i32 : i32
    %5 = tpu.assume_multiple %4, 128 : i32
    %c0_7 = arith.constant 0 : index
    %6 = arith.index_cast %5 : i32 to index
    %7 = vector.load %arg1[%c0_7, %6] : memref<3x128xf32, #tpu.memory_space<vmem>>, vector<3x128xf32>
    %8 = vector.extract_strided_slice %0 {offsets = [0, 0], sizes = [30, 1], strides = [1, 1]} : vector<30x3xf32> to vector<30x1xf32>
    %9 = vector.extract_strided_slice %7 {offsets = [0, 0], sizes = [1, 128], strides = [1, 1]} : vector<3x128xf32> to vector<1x128xf32>
    %10 = vector.broadcast %8 : vector<30x1xf32> to vector<30x128xf32>
    %11 = vector.broadcast %9 : vector<1x128xf32> to vector<30x128xf32>
    %12 = arith.mulf %10, %11 : vector<30x128xf32>
    %13 = vector.broadcast %1 : vector<30x1xf32> to vector<30x128xf32>
    %14 = arith.addf %13, %12 : vector<30x128xf32>
    %15 = vector.extract_strided_slice %0 {offsets = [0, 1], sizes = [30, 1], strides = [1, 1]} : vector<30x3xf32> to vector<30x1xf32>
    %16 = vector.extract_strided_slice %7 {offsets = [1, 0], sizes = [1, 128], strides = [1, 1]} : vector<3x128xf32> to vector<1x128xf32>
    %17 = vector.broadcast %15 : vector<30x1xf32> to vector<30x128xf32>
    %18 = vector.broadcast %16 : vector<1x128xf32> to vector<30x128xf32>
    %19 = arith.mulf %17, %18 : vector<30x128xf32>
    %20 = arith.addf %14, %19 : vector<30x128xf32>
    %21 = vector.extract_strided_slice %0 {offsets = [0, 2], sizes = [30, 1], strides = [1, 1]} : vector<30x3xf32> to vector<30x1xf32>
    %22 = vector.extract_strided_slice %7 {offsets = [2, 0], sizes = [1, 128], strides = [1, 1]} : vector<3x128xf32> to vector<1x128xf32>
    %23 = vector.broadcast %21 : vector<30x1xf32> to vector<30x128xf32>
    %24 = vector.broadcast %22 : vector<1x128xf32> to vector<30x128xf32>
    %25 = arith.mulf %23, %24 : vector<30x128xf32>
    %26 = arith.addf %20, %25 : vector<30x128xf32>
    %cst = arith.constant 0.000000e+00 : f32
    %27 = vector.broadcast %cst : f32 to vector<30x128xf32>
    %28 = arith.maximumf %26, %27 : vector<30x128xf32>
    %cst_8 = arith.constant dense<0.000000e+00> : vector<4x128xf32>
    %29 = tpu.matmul %2, %28, %cst_8 {dimension_numbers = #tpu.dot_dimension_numbers<[1], [0], [0], [1], [0, 0, 1, 1], [], []>} : vector<4x30xf32>, vector<30x128xf32>, vector<4x128xf32> -> vector<4x128xf32>
    %30 = vector.broadcast %3 : vector<4x1xf32> to vector<4x128xf32>
    %31 = arith.addf %29, %30 : vector<4x128xf32>
    %32 = math.tanh %31 : vector<4x128xf32>
    %cst_9 = arith.constant 2.000000e+00 : f32
    %33 = vector.broadcast %cst_9 : f32 to vector<4x128xf32>
    %34 = arith.mulf %33, %32 : vector<4x128xf32>
    %c0_10 = arith.constant 0 : index
    %35 = arith.index_cast %5 : i32 to index
    %36 = vector.load %arg6[%c0_10, %35] : memref<4x128xf32, #tpu.memory_space<vmem>>, vector<4x128xf32>
    tpu.vector_store %arg6[%c0_10, %35], %34 {strides = array<i32>} : memref<4x128xf32, #tpu.memory_space<vmem>>, vector<4x128xf32>,
    %c1_i32 = arith.constant 1 : i32
    return
  }
  func.func @transform_0(%arg0: i32) -> (i32, i32) {
    %c0_i32 = arith.constant 0 : i32
    %c0_i32_0 = arith.constant 0 : i32
    return %c0_i32, %arg0 : i32, i32
  }
  func.func @transform_1(%arg0: i32) -> (i32, i32) {
    %c0_i32 = arith.constant 0 : i32
    %c0_i32_0 = arith.constant 0 : i32
    %c0_i32_1 = arith.constant 0 : i32
    return %c0_i32, %c0_i32_0 : i32, i32
  }
  func.func @transform_2(%arg0: i32) -> (i32, i32) {
    %c0_i32 = arith.constant 0 : i32
    %c0_i32_0 = arith.constant 0 : i32
    %c0_i32_1 = arith.constant 0 : i32
    return %c0_i32, %c0_i32_0 : i32, i32
  }
  func.func @transform_3(%arg0: i32) -> (i32, i32) {
    %c0_i32 = arith.constant 0 : i32
    %c0_i32_0 = arith.constant 0 : i32
    %c0_i32_1 = arith.constant 0 : i32
    return %c0_i32, %c0_i32_0 : i32, i32
  }
  func.func @transform_4(%arg0: i32) -> (i32, i32) {
    %c0_i32 = arith.constant 0 : i32
    %c0_i32_0 = arith.constant 0 : i32
    %c0_i32_1 = arith.constant 0 : i32
    return %c0_i32, %c0_i32_0 : i32, i32
  }
  func.func @transform_5(%arg0: i32) -> (i32, i32) {
    %c0_i32 = arith.constant 0 : i32
    %c0_i32_0 = arith.constant 0 : i32
    return %c0_i32, %arg0 : i32, i32
  }
}

</mosaic_0001>

<llo_original>
// kernel: anet_forward.1
$region0: #{anet_forward.1}
  #allocation0 [shape = 'u32[]', space=smem, size = 0x4, offset = 0x4, fixed_abs, tag = 'smem constant byte address 0x4 - core index']
  #allocation1 [shape = 'u32[72,128]{1,0:T(1,128)}', space=vmem, size = 0x9000, scoped, tag = 'internal scratch']
  %s0 = inlined_call_operand.vmem [shape: f32[3,128], index: 0, kind: input, shape index: {}]
  %s1 = inlined_call_operand.vmem [shape: f32[30,3], index: 1, kind: input, shape index: {}]
  %s2 = inlined_call_operand.vmem [shape: f32[30,1], index: 2, kind: input, shape index: {}]
  %s3 = inlined_call_operand.vmem [shape: f32[4,30], index: 3, kind: input, shape index: {}]
  %s4 = inlined_call_operand.vmem [shape: f32[4,1], index: 4, kind: input, shape index: {}]
  %s5 = inlined_call_operand.vmem [shape: f32[4,128], index: 5, kind: output, shape index: {}]
  %s6 = sld [smem:[#allocation0]]
  $region30: #{anet_forward.1} parent=0
    _
  %s8 = ssub.s32 1, %s6
  %s9 = scalar_select 0, %s8, %s6
  // Predicated region
  $region2: #{anet_forward.1} parent=0 // pred_check
    _
  $region3: #{anet_forward.1} parent=0 // pred_check_branch
    %11 = sbr.rel (0) target = $region5
  $region4: #{anet_forward.1} parent=0 // pred_region
    _
  $region5: #{anet_forward.1} parent=0 // pred_fallthru
    _
  // Predicated region
  $region6: #{anet_forward.1} parent=0 // pred_check
    _
  $region7: #{anet_forward.1} parent=0 // pred_check_branch
    %13 = sbr.rel (0) target = $region9
  $region8: #{anet_forward.1} parent=0 // pred_region
    _
  $region9: #{anet_forward.1} parent=0 // pred_fallthru
    _
  // Predicated region
  $region10: #{anet_forward.1} parent=0 // pred_check
    _
  $region11: #{anet_forward.1} parent=0 // pred_check_branch
    %15 = sbr.rel (0) target = $region13
  $region12: #{anet_forward.1} parent=0 // pred_region
    _
  $region13: #{anet_forward.1} parent=0 // pred_fallthru
    _
  // Predicated region
  $region14: #{anet_forward.1} parent=0 // pred_check
    _
  $region15: #{anet_forward.1} parent=0 // pred_check_branch
    %17 = sbr.rel (0) target = $region17
  $region16: #{anet_forward.1} parent=0 // pred_region
    _
  $region17: #{anet_forward.1} parent=0 // pred_fallthru
    _
  // Predicated region
  $region18: #{anet_forward.1} parent=0 // pred_check
    _
  $region19: #{anet_forward.1} parent=0 // pred_check_branch
    %19 = sbr.rel (0) target = $region21
  $region20: #{anet_forward.1} parent=0 // pred_region
    _
  $region21: #{anet_forward.1} parent=0 // pred_fallthru
    _
  %v20 = vld [vmem:[%s1] sm:$0xff]
  %v21 = vld [vmem:[%s1 + $0x8] sm:$0xff]
  %v22 = vld [vmem:[%s1 + $0x10] sm:$0xff]
  %v23 = vld [vmem:[%s1 + $0x18] sm:$0x3f]
  %v24 = vld [vmem:[%s2] sm:$0xff]
  %v25 = vld [vmem:[%s2 + $0x8] sm:$0xff]
  %v26 = vld [vmem:[%s2 + $0x10] sm:$0xff]
  %v27 = vld [vmem:[%s2 + $0x18] sm:$0x3f]
  %v28 = vld [vmem:[%s3] sm:$0xf]
  %v29 = vld [vmem:[%s4] sm:$0xf]
  %v30 = vld [vmem:[%s0] sm:$0x7]
  %32 = vset.pattern.permute.xlu0 0
  %33 = vperm.xlu0 %32, %v20
  %v34 = vpop.permute.xlu0 %33
  %37 = vset.pattern.permute.xlu0 0
  %38 = vperm.xlu0 %37, %v21
  %v39 = vpop.permute.xlu0 %38
  %42 = vset.pattern.permute.xlu0 0
  %43 = vperm.xlu0 %42, %v22
  %v44 = vpop.permute.xlu0 %43
  %47 = vset.pattern.permute.xlu0 0
  %48 = vperm.xlu0 %47, %v23
  %v49 = vpop.permute.xlu0 %48
  %v51 = vperm.slane %v30, 0
  %v52 = vmul.f32 %v34, %v51
  %v53 = vmul.f32 %v39, %v51
  %v54 = vmul.f32 %v44, %v51
  %v55 = vmul.f32 %v49, %v51
  %57 = vset.pattern.permute.xlu0 0
  %58 = vperm.xlu0 %57, %v24
  %v59 = vpop.permute.xlu0 %58
  %62 = vset.pattern.permute.xlu0 0
  %63 = vperm.xlu0 %62, %v25
  %v64 = vpop.permute.xlu0 %63
  %67 = vset.pattern.permute.xlu0 0
  %68 = vperm.xlu0 %67, %v26
  %v69 = vpop.permute.xlu0 %68
  %72 = vset.pattern.permute.xlu0 0
  %73 = vperm.xlu0 %72, %v27
  %v74 = vpop.permute.xlu0 %73
  %v76 = vadd.f32 %v59, %v52
  %v77 = vadd.f32 %v64, %v53
  %v78 = vadd.f32 %v69, %v54
  %v79 = vadd.f32 %v74, %v55
  %80 = vset.pattern.permute.xlu0 1
  %81 = vperm.xlu0 %80, %v20
  %v82 = vpop.permute.xlu0 %81
  %84 = vset.pattern.permute.xlu0 1
  %85 = vperm.xlu0 %84, %v21
  %v86 = vpop.permute.xlu0 %85
  %88 = vset.pattern.permute.xlu0 1
  %89 = vperm.xlu0 %88, %v22
  %v90 = vpop.permute.xlu0 %89
  %92 = vset.pattern.permute.xlu0 1
  %93 = vperm.xlu0 %92, %v23
  %v94 = vpop.permute.xlu0 %93
  %v96 = vperm.slane %v30, 1
  %v97 = vmul.f32 %v82, %v96
  %v98 = vmul.f32 %v86, %v96
  %v99 = vmul.f32 %v90, %v96
  %v100 = vmul.f32 %v94, %v96
  %v101 = vadd.f32 %v76, %v97
  %v102 = vadd.f32 %v77, %v98
  %v103 = vadd.f32 %v78, %v99
  %v104 = vadd.f32 %v79, %v100
  %105 = vset.pattern.permute.xlu0 2
  %106 = vperm.xlu0 %105, %v20
  %v107 = vpop.permute.xlu0 %106
  %109 = vset.pattern.permute.xlu0 2
  %110 = vperm.xlu0 %109, %v21
  %v111 = vpop.permute.xlu0 %110
  %113 = vset.pattern.permute.xlu0 2
  %114 = vperm.xlu0 %113, %v22
  %v115 = vpop.permute.xlu0 %114
  %117 = vset.pattern.permute.xlu0 2
  %118 = vperm.xlu0 %117, %v23
  %v119 = vpop.permute.xlu0 %118
  %v121 = vperm.slane %v30, 2
  %v122 = vmul.f32 %v107, %v121
  %v123 = vmul.f32 %v111, %v121
  %v124 = vmul.f32 %v115, %v121
  %v125 = vmul.f32 %v119, %v121
  %v126 = vadd.f32 %v101, %v122
  %v127 = vadd.f32 %v102, %v123
  %v128 = vadd.f32 %v103, %v124
  %v129 = vadd.f32 %v104, %v125
  %v130 = vmax.f32 %v126, 0.0
  %v131 = vmax.f32 %v127, 0.0
  %v132 = vmax.f32 %v128, 0.0
  %v133 = vmax.f32 %v129, 0.0
  %135 = vset.pattern.permute.xlu0 0
  %136 = vperm.xlu0 %135, %v29
  %v137 = vpop.permute.xlu0 %136
  %vm139 = vcmask 244736
  %v141 = vsel %vm139, %v28, 0
  %vm143 = vcmask 1045504
  %v145 = vsel %vm143, %v133, 0
  %147 = vmatpush.msra.mxu0 0.0
  %148 = vmatpush.msra.mxu0 0.0
  %149 = vmatpush.msra.mxu0 0.0
  %150 = vmatpush.msra.mxu0 0.0
  %151 = vmatpush.msra.mxu0 0.0
  %152 = vmatpush.msra.mxu0 0.0
  %153 = vmatpush.msra.mxu0 0.0
  %154 = vmatpush.msra.mxu0 0.0
  %155 = vmatpush.msra.mxu0 0.0
  %156 = vmatpush.msra.mxu0 0.0
  %157 = vmatpush.msra.mxu0 0.0
  %158 = vmatpush.msra.mxu0 0.0
  %159 = vmatpush.msra.mxu0 %v145
  %160 = vmatpush.msra.mxu0 %v132
  %161 = vmatpush.msra.mxu0 %v131
  %162 = vmatpush.msra.mxu0 %v130
  %163 = vmatmul.f32.gmra.mxu0 %v141
  %v164 = vpop.f32.mrf.mxu0
  %v165 = vadd.f32 %v137, %v164
  %166 = vdwg.mxu0
  %v167 = vtanh.pop %v165
  %v168 = vmul.f32 %v167, 2.0
  %169 = vst [vmem:[%s5] sm:$0xf] %v168
  // Predicated region
  $region22: #{anet_forward.1} parent=0 // pred_check
    _
  $region23: #{anet_forward.1} parent=0 // pred_check_branch
    %171 = sbr.rel (0) target = $region25
  $region24: #{anet_forward.1} parent=0 // pred_region
    _
  $region25: #{anet_forward.1} parent=0 // pred_fallthru
    _
  // Predicated region
  $region26: #{anet_forward.1} parent=0 // pred_check
    _
  $region27: #{anet_forward.1} parent=0 // pred_check_branch
    %173 = sbr.rel (0) target = $region29
  $region28: #{anet_forward.1} parent=0 // pred_region
    _
  $region29: #{anet_forward.1} parent=0 // pred_fallthru
    _

</llo_original>
